<compile_context>
chip_gen: v6e
topology: v6e:2x2x1
jax: 0.10.0
libtpu: 0.0.40
codegen_flags: <defaults>
</compile_context>

<pallas_src>
import numpy as np
import jax
import jax.numpy as jnp
from jax.experimental import pallas as pl
from jax.experimental.pallas import tpu as pltpu

# ---- problem sizes (small, consistent with the module) ----
N = 2               # batch
CIN = 4             # in_channels
CMID = 32           # hidden channels of the head (fixed by the module)
CSE = CMID // 16    # SE bottleneck = 2
NOUT = 8            # num_outputs
H = W = 16
HW = H * W          # 256
L = N * HW          # 512 lanes: both images side by side
K36 = 9 * CIN       # 36 real im2col rows
K40 = 40            # padded to a whole number of sublane tiles
EPS = 1e-5
PKW = K40 + 1               # packed CMID-row width: [w40 | bn_shift]
WBROWS = NOUT + 2 * CSE     # 12
WBCOLS = CMID + 1           # 33


def _build_tap_mask():
    """(K40, L) compile-time 0/1 mask: 'same'-conv zero padding + the 4 pad rows.

    Row t*CIN + c (t = ky*3+kx) masks channel c of tap (ky, kx). Lane p belongs to image
    p // HW with local pixel q = p % HW. Every lane where the in-kernel circular roll wraps
    across a row or image boundary is masked to zero here (true for 3x3, stride 1).
    """
    q = np.arange(L) % HW
    py, px = q // W, q % W
    rows = []
    for ky in range(3):
        for kx in range(3):
            oy, ox = ky - 1, kx - 1
            valid = ((px + ox >= 0) & (px + ox < W) &
                     (py + oy >= 0) & (py + oy < H)).astype(np.float32)
            rows.append(np.repeat(valid[None, :], CIN, axis=0))
    rows.append(np.zeros((K40 - K36, L), np.float32))          # pad rows 36..39
    return jnp.asarray(np.concatenate(rows, axis=0))            # (40, 512)


def yolo_head_kernel(x_ref, mask_ref, pk_ref, wb_ref, out_ref):
    """Whole batch in one invocation; channel rows, N*HW = 512 on the lane axis.

    x_ref   : (N, CIN, HW)      flattened NCHW input (free reshape; no transpose / pad)
    mask_ref: (K40, L)          constant 0/1 edge mask (also zeroes the 4 pad rows)
    pk_ref  : (CMID, K40+1)     [3x3 weights w/ BN scale folded, im2col order, zero-padded | bn_shift]
    wb_ref  : (NOUT+2*CSE, CMID+1)  rows 0..7: [1x1 weight | bias];
                                    rows 8..9: fc1.weight; rows 10..11: fc2.weight.T
    out_ref : (N, NOUT, HW)     lane-dense, already NCHW-ordered
    """
    # Both images side by side on lanes; the 256-lane split is lane-tile aligned.
    x = jnp.concatenate([x_ref[0], x_ref[1]], axis=1)                 # (CIN, L)

    pk = pk_ref[...]
    w40 = pk[:, :K40]                                                  # (CMID, K40)
    bn_shift = pk[:, K40:K40 + 1]                                      # (CMID, 1)
    wb = wb_ref[...]
    w1 = wb[:NOUT, :CMID]                                              # (NOUT, CMID)
    b1 = wb[:NOUT, CMID:CMID + 1]                                      # (NOUT, 1)
    wse1 = wb[NOUT:NOUT + CSE, :CMID]                                  # (CSE, CMID) = fc1.weight
    wse2t = wb[NOUT + CSE:NOUT + 2 * CSE, :CMID]                       # (CSE, CMID) = fc2.weight.T

    # --- im2col slab (K40, L): 9 static XLU lane-rolls + one constant-mask multiply ---
    pieces = []
    for ky in range(3):
        for kx in range(3):
            d = (ky - 1) * W + (kx - 1)                                # tap offset on flat lanes
            pieces.append(x if d == 0 else pltpu.roll(x, shift=(-d) % L, axis=1))
    pieces.append(x)                                                   # filler for the 4 pad rows
    im2col = jnp.concatenate(pieces, axis=0) * mask_ref[...]           # (K40, L)

    # --- 3x3 conv (one MXU matmul) + folded conv-bias/BN(eval) shift + ReLU ---
    conv = jnp.dot(w40, im2col, preferred_element_type=jnp.float32)    # (CMID, L)
    h = jnp.maximum(conv + bn_shift, 0.0)

    # --- SE squeeze, row-oriented (mean-pool commutes with fc1):
    #       z_img = relu(fc1 @ mean_hw(h_img)) = relu(mean_lanes(fc1 @ h_img))
    #     so s comes out as a (1, CMID) row with no transpose/relayout anywhere. ---
    zf = jnp.dot(wse1, h, preferred_element_type=jnp.float32)          # (CSE, L)
    inv_hw = 1.0 / HW
    z0 = jnp.maximum(jnp.sum(zf[:, :HW], axis=1, keepdims=True) * inv_hw, 0.0)   # (CSE, 1)
    z1 = jnp.maximum(jnp.sum(zf[:, HW:], axis=1, keepdims=True) * inv_hw, 0.0)
    s0 = jax.nn.sigmoid(jnp.sum(wse2t * z0, axis=0, keepdims=True))              # (1, CMID)
    s1 = jax.nn.sigmoid(jnp.sum(wse2t * z1, axis=0, keepdims=True))

    # --- 1x1 conv with the SE scale folded into the weights (diagonal commutes) ---
    out0 = jnp.dot(w1 * s0, h[:, :HW], preferred_element_type=jnp.float32) + b1  # (NOUT, HW)
    out1 = jnp.dot(w1 * s1, h[:, HW:], preferred_element_type=jnp.float32) + b1
    out_ref[0] = out0.astype(out_ref.dtype)
    out_ref[1] = out1.astype(out_ref.dtype)


def pack_yolo_head_params(params):
    """One-time parameter packing (hoisted out of the per-call path)."""
    (w_conv1, b_conv1, bn_gamma, bn_beta, bn_mean, bn_var,
     w_fc1, w_fc2, w_conv2, b_conv2) = params
    # w3m[o, (ky*3+kx)*CIN + c] = w_conv1[o, c, ky, kx]  (matches the im2col row order)
    w3m = jnp.transpose(w_conv1, (0, 2, 3, 1)).reshape(CMID, K36)
    bn_scale = bn_gamma / jnp.sqrt(bn_var + EPS)                               # (CMID,)
    w40 = jnp.concatenate(
        [w3m * bn_scale[:, None], jnp.zeros((CMID, K40 - K36), jnp.float32)], axis=1)
    bn_shift = (bn_beta + (b_conv1 - bn_mean) * bn_scale).reshape(CMID, 1)
    pk = jnp.concatenate([w40, bn_shift], axis=1)                              # (CMID, K40+1)

    w1 = w_conv2[:, :, 0, 0]                                                   # (NOUT, CMID)
    b1 = b_conv2.reshape(NOUT, 1)
    zpad = jnp.zeros((CSE, 1), jnp.float32)
    wb = jnp.concatenate([
        jnp.concatenate([w1, b1], axis=1),                                     # (NOUT, CMID+1)
        jnp.concatenate([w_fc1, zpad], axis=1),                                # (CSE,  CMID+1)
        jnp.concatenate([w_fc2.T, zpad], axis=1),                              # (CSE,  CMID+1)
    ], axis=0)                                                                 # (12, 33)
    return _build_tap_mask(), pk, wb


@jax.jit
def yolo_head_pallas(x_nchw, mask, pk, wb):
    x_flat = x_nchw.reshape(N, CIN, HW)          # free contiguous reshape, no transpose
    out_flat = pl.pallas_call(
        yolo_head_kernel,
        out_shape=jax.ShapeDtypeStruct((N, NOUT, HW), jnp.float32),
        grid=(1,),
        in_specs=[
            pl.BlockSpec((N, CIN, HW), lambda i: (0, 0, 0)),
            pl.BlockSpec((K40, L), lambda i: (0, 0)),
            pl.BlockSpec((CMID, PKW), lambda i: (0, 0)),
            pl.BlockSpec((WBROWS, WBCOLS), lambda i: (0, 0)),
        ],
        out_specs=pl.BlockSpec((N, NOUT, HW), lambda i: (0, 0, 0)),
    )(x_flat, mask, pk, wb)
    # Output is already channel-major -> free reshape back to NCHW.
    return out_flat.reshape(N, NOUT, H, W)


def yolo_head_reference(x, params):
    """Pure-JAX reference matching the PyTorch forward (eval-mode BN)."""
    (w_conv1, b_conv1, bn_gamma, bn_beta, bn_mean, bn_var,
     w_fc1, w_fc2, w_conv2, b_conv2) = params
    h = jax.lax.conv_general_dilated(
        x, w_conv1, (1, 1), "SAME",
        dimension_numbers=("NCHW", "OIHW", "NCHW")) + b_conv1[None, :, None, None]
    h = ((h - bn_mean[None, :, None, None])
         / jnp.sqrt(bn_var + EPS)[None, :, None, None]
         * bn_gamma[None, :, None, None] + bn_beta[None, :, None, None])
    h = jnp.maximum(h, 0.0)
    pooled = h.mean(axis=(2, 3))                                       # (N, CMID)
    z = jnp.maximum(pooled @ w_fc1.T, 0.0)
    s = jax.nn.sigmoid(z @ w_fc2.T)
    y = h * s[:, :, None, None]
    out = jax.lax.conv_general_dilated(
        y, w_conv2, (1, 1), "VALID",
        dimension_numbers=("NCHW", "OIHW", "NCHW")) + b_conv2[None, :, None, None]
    return out


if __name__ == "__main__":
    key = jax.random.PRNGKey(0)
    ks = jax.random.split(key, 11)

    # deterministic synthetic parameters (shapes from YOLOHead.__init__)
    w_conv1 = 0.1 * jax.random.normal(ks[0], (CMID, CIN, 3, 3), jnp.float32)
    b_conv1 = 0.1 * jax.random.normal(ks[1], (CMID,), jnp.float32)
    bn_gamma = 1.0 + 0.1 * jax.random.normal(ks[2], (CMID,), jnp.float32)
    bn_beta = 0.1 * jax.random.normal(ks[3], (CMID,), jnp.float32)
    bn_mean = 0.1 * jax.random.normal(ks[4], (CMID,), jnp.float32)
    bn_var = 0.5 + jnp.abs(jax.random.normal(ks[5], (CMID,), jnp.float32))
    w_fc1 = 0.2 * jax.random.normal(ks[6], (CSE, CMID), jnp.float32)     # Linear(32 -> 2)
    w_fc2 = 0.2 * jax.random.normal(ks[7], (CMID, CSE), jnp.float32)     # Linear(2 -> 32)
    w_conv2 = 0.1 * jax.random.normal(ks[8], (NOUT, CMID, 1, 1), jnp.float32)
    b_conv2 = 0.1 * jax.random.normal(ks[9], (NOUT,), jnp.float32)
    params = (w_conv1, b_conv1, bn_gamma, bn_beta, bn_mean, bn_var,
              w_fc1, w_fc2, w_conv2, b_conv2)

    x = jax.random.normal(ks[10], (N, CIN, H, W), jnp.float32)           # NCHW like PyTorch

    mask, pk, wb = pack_yolo_head_params(params)                         # one-time packing
    out = jax.block_until_ready(yolo_head_pallas(x, mask, pk, wb))
    ref = jax.block_until_ready(yolo_head_reference(x, params))

    assert out.shape == (N, NOUT, H, W), out.shape
    assert jnp.allclose(out, ref, atol=2e-4, rtol=2e-4), \
        float(jnp.max(jnp.abs(out - ref)))
    print("KERNEL_OK")
</pallas_src>

<mosaic_0001>
module attributes {stable_mosaic.version = 11 : i64} {
  func.func @yolo_head_kernel(%arg0: i32, %arg1: memref<2x4x256xf32, #tpu.memory_space<vmem>>, %arg2: memref<40x512xf32, #tpu.memory_space<vmem>>, %arg3: memref<32x41xf32, #tpu.memory_space<vmem>>, %arg4: memref<12x33xf32, #tpu.memory_space<vmem>>, %arg5: memref<2x8x256xf32, #tpu.memory_space<vmem>>) attributes {dimension_semantics = [#tpu.dimension_semantics<arbitrary>], iteration_bounds = array<i64: 1>, scalar_prefetch = 0 : i64, scratch_operands = 0 : i64, tpu.core_type = #tpu.core_type<tc>, window_params = [{pipeline_mode = #tpu.pipeline_mode<synchronous>, transform_indices = @transform_0, window_bounds = array<i64: 2, 4, 256>}, {pipeline_mode = #tpu.pipeline_mode<synchronous>, transform_indices = @transform_1, window_bounds = array<i64: 40, 512>}, {pipeline_mode = #tpu.pipeline_mode<synchronous>, transform_indices = @transform_2, window_bounds = array<i64: 32, 41>}, {pipeline_mode = #tpu.pipeline_mode<synchronous>, transform_indices = @transform_3, window_bounds = array<i64: 12, 33>}, {pipeline_mode = #tpu.pipeline_mode<synchronous>, transform_indices = @transform_4, window_bounds = array<i64: 2, 8, 256>}]} {
    %c0 = arith.constant 0 : index
    %c0_0 = arith.constant 0 : index
    %c0_1 = arith.constant 0 : index
    %0 = vector.load %arg1[%c0, %c0_0, %c0_1] : memref<2x4x256xf32, #tpu.memory_space<vmem>>, vector<1x4x256xf32>
    %1 = vector.shape_cast %0 : vector<1x4x256xf32> to vector<4x256xf32>
    %c1 = arith.constant 1 : index
    %c0_2 = arith.constant 0 : index
    %c0_3 = arith.constant 0 : index
    %2 = vector.load %arg1[%c1, %c0_2, %c0_3] : memref<2x4x256xf32, #tpu.memory_space<vmem>>, vector<1x4x256xf32>
    %3 = vector.shape_cast %2 : vector<1x4x256xf32> to vector<4x256xf32>
    %4 = tpu.concatenate %1, %3 in 1 : vector<4x256xf32>, vector<4x256xf32> -> vector<4x512xf32>
    %c0_4 = arith.constant 0 : index
    %c0_5 = arith.constant 0 : index
    %5 = vector.load %arg3[%c0_4, %c0_5] : memref<32x41xf32, #tpu.memory_space<vmem>>, vector<32x41xf32>
    %6 = vector.extract_strided_slice %5 {offsets = [0, 0], sizes = [32, 40], strides = [1, 1]} : vector<32x41xf32> to vector<32x40xf32>
    %7 = vector.extract_strided_slice %5 {offsets = [0, 40], sizes = [32, 1], strides = [1, 1]} : vector<32x41xf32> to vector<32x1xf32>
    %c0_6 = arith.constant 0 : index
    %c0_7 = arith.constant 0 : index
    %8 = vector.load %arg4[%c0_6, %c0_7] : memref<12x33xf32, #tpu.memory_space<vmem>>, vector<12x33xf32>
    %9 = vector.extract_strided_slice %8 {offsets = [0, 0], sizes = [8, 32], strides = [1, 1]} : vector<12x33xf32> to vector<8x32xf32>
    %10 = vector.extract_strided_slice %8 {offsets = [0, 32], sizes = [8, 1], strides = [1, 1]} : vector<12x33xf32> to vector<8x1xf32>
    %11 = vector.extract_strided_slice %8 {offsets = [8, 0], sizes = [2, 32], strides = [1, 1]} : vector<12x33xf32> to vector<2x32xf32>
    %12 = vector.extract_strided_slice %8 {offsets = [10, 0], sizes = [2, 32], strides = [1, 1]} : vector<12x33xf32> to vector<2x32xf32>
    %c17_i32 = arith.constant 17 : i32
    %13 = tpu.dynamic_rotate %4 by %c17_i32 dim 1 : vector<4x512xf32>, i32 -> vector<4x512xf32>
    %c16_i32 = arith.constant 16 : i32
    %14 = tpu.dynamic_rotate %4 by %c16_i32 dim 1 : vector<4x512xf32>, i32 -> vector<4x512xf32>
    %c15_i32 = arith.constant 15 : i32
    %15 = tpu.dynamic_rotate %4 by %c15_i32 dim 1 : vector<4x512xf32>, i32 -> vector<4x512xf32>
    %c1_i32 = arith.constant 1 : i32
    %16 = tpu.dynamic_rotate %4 by %c1_i32 dim 1 : vector<4x512xf32>, i32 -> vector<4x512xf32>
    %c511_i32 = arith.constant 511 : i32
    %17 = tpu.dynamic_rotate %4 by %c511_i32 dim 1 : vector<4x512xf32>, i32 -> vector<4x512xf32>
    %c497_i32 = arith.constant 497 : i32
    %18 = tpu.dynamic_rotate %4 by %c497_i32 dim 1 : vector<4x512xf32>, i32 -> vector<4x512xf32>
    %c496_i32 = arith.constant 496 : i32
    %19 = tpu.dynamic_rotate %4 by %c496_i32 dim 1 : vector<4x512xf32>, i32 -> vector<4x512xf32>
    %c495_i32 = arith.constant 495 : i32
    %20 = tpu.dynamic_rotate %4 by %c495_i32 dim 1 : vector<4x512xf32>, i32 -> vector<4x512xf32>
    %21 = tpu.concatenate %13, %14, %15, %16, %4, %17, %18, %19, %20, %4 in 0 : vector<4x512xf32>, vector<4x512xf32>, vector<4x512xf32>, vector<4x512xf32>, vector<4x512xf32>, vector<4x512xf32>, vector<4x512xf32>, vector<4x512xf32>, vector<4x512xf32>, vector<4x512xf32> -> vector<40x512xf32>
    %c0_8 = arith.constant 0 : index
    %c0_9 = arith.constant 0 : index
    %22 = vector.load %arg2[%c0_8, %c0_9] : memref<40x512xf32, #tpu.memory_space<vmem>>, vector<40x512xf32>
    %23 = arith.mulf %21, %22 : vector<40x512xf32>
    %cst = arith.constant dense<0.000000e+00> : vector<32x512xf32>
    %24 = tpu.matmul %6, %23, %cst {dimension_numbers = #tpu.dot_dimension_numbers<[1], [0], [0], [1], [0, 0, 1, 1], [], []>} : vector<32x40xf32>, vector<40x512xf32>, vector<32x512xf32> -> vector<32x512xf32>
    %25 = vector.broadcast %7 : vector<32x1xf32> to vector<32x512xf32>
    %26 = arith.addf %24, %25 : vector<32x512xf32>
    %cst_10 = arith.constant 0.000000e+00 : f32
    %27 = vector.broadcast %cst_10 : f32 to vector<32x512xf32>
    %28 = arith.maximumf %26, %27 : vector<32x512xf32>
    %cst_11 = arith.constant dense<0.000000e+00> : vector<2x512xf32>
    %29 = tpu.matmul %11, %28, %cst_11 {dimension_numbers = #tpu.dot_dimension_numbers<[1], [0], [0], [1], [0, 0, 1, 1], [], []>} : vector<2x32xf32>, vector<32x512xf32>, vector<2x512xf32> -> vector<2x512xf32>
    %30 = vector.extract_strided_slice %29 {offsets = [0, 0], sizes = [2, 256], strides = [1, 1]} : vector<2x512xf32> to vector<2x256xf32>
    %cst_12 = arith.constant dense<0.000000e+00> : vector<2xf32>
    %31 = vector.multi_reduction <add>, %30, %cst_12 [1] : vector<2x256xf32> to vector<2xf32>
    %32 = vector.shape_cast %31 : vector<2xf32> to vector<2x1xf32>
    %cst_13 = arith.constant 3.906250e-03 : f32
    %33 = vector.broadcast %cst_13 : f32 to vector<2x1xf32>
    %34 = arith.mulf %32, %33 : vector<2x1xf32>
    %cst_14 = arith.constant 0.000000e+00 : f32
    %35 = vector.broadcast %cst_14 : f32 to vector<2x1xf32>
    %36 = arith.maximumf %34, %35 : vector<2x1xf32>
    %37 = vector.extract_strided_slice %29 {offsets = [0, 256], sizes = [2, 256], strides = [1, 1]} : vector<2x512xf32> to vector<2x256xf32>
    %cst_15 = arith.constant dense<0.000000e+00> : vector<2xf32>
    %38 = vector.multi_reduction <add>, %37, %cst_15 [1] : vector<2x256xf32> to vector<2xf32>
    %39 = vector.shape_cast %38 : vector<2xf32> to vector<2x1xf32>
    %cst_16 = arith.constant 3.906250e-03 : f32
    %40 = vector.broadcast %cst_16 : f32 to vector<2x1xf32>
    %41 = arith.mulf %39, %40 : vector<2x1xf32>
    %cst_17 = arith.constant 0.000000e+00 : f32
    %42 = vector.broadcast %cst_17 : f32 to vector<2x1xf32>
    %43 = arith.maximumf %41, %42 : vector<2x1xf32>
    %44 = vector.broadcast %36 : vector<2x1xf32> to vector<2x32xf32>
    %45 = arith.mulf %12, %44 : vector<2x32xf32>
    %cst_18 = arith.constant dense<0.000000e+00> : vector<32xf32>
    %46 = vector.multi_reduction <add>, %45, %cst_18 [0] : vector<2x32xf32> to vector<32xf32>
    %47 = vector.shape_cast %46 : vector<32xf32> to vector<1x32xf32>
    %48 = arith.negf %47 : vector<1x32xf32>
    %49 = math.exp %48 : vector<1x32xf32>
    %cst_19 = arith.constant 1.000000e+00 : f32
    %50 = vector.broadcast %cst_19 : f32 to vector<1x32xf32>
    %51 = arith.addf %50, %49 : vector<1x32xf32>
    %52 = arith.divf %50, %51 : vector<1x32xf32>
    %53 = vector.broadcast %43 : vector<2x1xf32> to vector<2x32xf32>
    %54 = arith.mulf %12, %53 : vector<2x32xf32>
    %cst_20 = arith.constant dense<0.000000e+00> : vector<32xf32>
    %55 = vector.multi_reduction <add>, %54, %cst_20 [0] : vector<2x32xf32> to vector<32xf32>
    %56 = vector.shape_cast %55 : vector<32xf32> to vector<1x32xf32>
    %57 = arith.negf %56 : vector<1x32xf32>
    %58 = math.exp %57 : vector<1x32xf32>
    %cst_21 = arith.constant 1.000000e+00 : f32
    %59 = vector.broadcast %cst_21 : f32 to vector<1x32xf32>
    %60 = arith.addf %59, %58 : vector<1x32xf32>
    %61 = arith.divf %59, %60 : vector<1x32xf32>
    %62 = vector.broadcast %52 : vector<1x32xf32> to vector<8x32xf32>
    %63 = arith.mulf %9, %62 : vector<8x32xf32>
    %64 = vector.extract_strided_slice %28 {offsets = [0, 0], sizes = [32, 256], strides = [1, 1]} : vector<32x512xf32> to vector<32x256xf32>
    %cst_22 = arith.constant dense<0.000000e+00> : vector<8x256xf32>
    %65 = tpu.matmul %63, %64, %cst_22 {dimension_numbers = #tpu.dot_dimension_numbers<[1], [0], [0], [1], [0, 0, 1, 1], [], []>} : vector<8x32xf32>, vector<32x256xf32>, vector<8x256xf32> -> vector<8x256xf32>
    %66 = vector.broadcast %10 : vector<8x1xf32> to vector<8x256xf32>
    %67 = arith.addf %65, %66 : vector<8x256xf32>
    %68 = vector.broadcast %61 : vector<1x32xf32> to vector<8x32xf32>
    %69 = arith.mulf %9, %68 : vector<8x32xf32>
    %70 = vector.extract_strided_slice %28 {offsets = [0, 256], sizes = [32, 256], strides = [1, 1]} : vector<32x512xf32> to vector<32x256xf32>
    %cst_23 = arith.constant dense<0.000000e+00> : vector<8x256xf32>
    %71 = tpu.matmul %69, %70, %cst_23 {dimension_numbers = #tpu.dot_dimension_numbers<[1], [0], [0], [1], [0, 0, 1, 1], [], []>} : vector<8x32xf32>, vector<32x256xf32>, vector<8x256xf32> -> vector<8x256xf32>
    %72 = vector.broadcast %10 : vector<8x1xf32> to vector<8x256xf32>
    %73 = arith.addf %71, %72 : vector<8x256xf32>
    %c0_24 = arith.constant 0 : index
    %c0_25 = arith.constant 0 : index
    %c0_26 = arith.constant 0 : index
    %74 = vector.load %arg5[%c0_24, %c0_25, %c0_26] : memref<2x8x256xf32, #tpu.memory_space<vmem>>, vector<1x8x256xf32>
    %75 = vector.shape_cast %74 : vector<1x8x256xf32> to vector<8x256xf32>
    %76 = vector.shape_cast %67 : vector<8x256xf32> to vector<1x8x256xf32>
    tpu.vector_store %arg5[%c0_24, %c0_25, %c0_26], %76 {strides = array<i32>} : memref<2x8x256xf32, #tpu.memory_space<vmem>>, vector<1x8x256xf32>,
    %c1_27 = arith.constant 1 : index
    %c0_28 = arith.constant 0 : index
    %c0_29 = arith.constant 0 : index
    %77 = vector.load %arg5[%c1_27, %c0_28, %c0_29] : memref<2x8x256xf32, #tpu.memory_space<vmem>>, vector<1x8x256xf32>
    %78 = vector.shape_cast %77 : vector<1x8x256xf32> to vector<8x256xf32>
    %79 = vector.shape_cast %73 : vector<8x256xf32> to vector<1x8x256xf32>
    tpu.vector_store %arg5[%c1_27, %c0_28, %c0_29], %79 {strides = array<i32>} : memref<2x8x256xf32, #tpu.memory_space<vmem>>, vector<1x8x256xf32>,
    return
  }
  func.func @transform_0(%arg0: i32) -> (i32, i32, i32) {
    %c0_i32 = arith.constant 0 : i32
    %c0_i32_0 = arith.constant 0 : i32
    %c0_i32_1 = arith.constant 0 : i32
    %c0_i32_2 = arith.constant 0 : i32
    return %c0_i32, %c0_i32_0, %c0_i32_1 : i32, i32, i32
  }
  func.func @transform_1(%arg0: i32) -> (i32, i32) {
    %c0_i32 = arith.constant 0 : i32
    %c0_i32_0 = arith.constant 0 : i32
    %c0_i32_1 = arith.constant 0 : i32
    return %c0_i32, %c0_i32_0 : i32, i32
  }
  func.func @transform_2(%arg0: i32) -> (i32, i32) {
    %c0_i32 = arith.constant 0 : i32
    %c0_i32_0 = arith.constant 0 : i32
    %c0_i32_1 = arith.constant 0 : i32
    return %c0_i32, %c0_i32_0 : i32, i32
  }
  func.func @transform_3(%arg0: i32) -> (i32, i32) {
    %c0_i32 = arith.constant 0 : i32
    %c0_i32_0 = arith.constant 0 : i32
    %c0_i32_1 = arith.constant 0 : i32
    return %c0_i32, %c0_i32_0 : i32, i32
  }
  func.func @transform_4(%arg0: i32) -> (i32, i32, i32) {
    %c0_i32 = arith.constant 0 : i32
    %c0_i32_0 = arith.constant 0 : i32
    %c0_i32_1 = arith.constant 0 : i32
    %c0_i32_2 = arith.constant 0 : i32
    return %c0_i32, %c0_i32_0, %c0_i32_1 : i32, i32, i32
  }
}

</mosaic_0001>

<llo_original>
// kernel: yolo_head_pallas.1
$region0: #{yolo_head_pallas.1}
  #allocation0 [shape = 'u32[]', space=smem, size = 0x4, offset = 0x4, fixed_abs, tag = 'smem constant byte address 0x4 - core index']
  #allocation1 [shape = 'u32[144,128]{1,0:T(1,128)}', space=vmem, size = 0x12000, scoped, tag = 'internal scratch']
  %s0 = inlined_call_operand.vmem [shape: f32[2,4,256], index: 0, kind: input, shape index: {}]
  %s1 = inlined_call_operand.hbm [shape: f32[40,512], index: 1, kind: input, shape index: {}]
  %s2 = inlined_call_operand.vmem [shape: f32[32,41], index: 2, kind: input, shape index: {}]
  %s3 = inlined_call_operand.vmem [shape: f32[12,33], index: 3, kind: input, shape index: {}]
  %s4 = inlined_call_operand.vmem [shape: f32[2,8,256], index: 4, kind: output, shape index: {}]
  %s5 = sld [smem:[#allocation0]]
  $region30: #{yolo_head_pallas.1} parent=0
    _
  %s7 = ssub.s32 1, %s5
  %s8 = scalar_select 0, %s7, %s5
  $region1: #{yolo_head_pallas.1} parent=0
    #allocation2 [shape = 'u8[81920]{0}', space=vmem, size = 0x14000, scoped, tag = 'input window, operand 1, single buffered']
    #allocation3 [shape = 's32[1]{0}', space=sflag, size = 0x4, scoped, tag = 'scoped memory for yolo_head_pallas.1']
    %9 = vsyncpa [#allocation3], 0
    // Predicated region
    $region2: #{yolo_head_pallas.1} parent=1 // pred_check
      _
    $region3: #{yolo_head_pallas.1} parent=1 // pred_check_branch
      %11 = sbr.rel (0) target = $region5
    $region4: #{yolo_head_pallas.1} parent=1 // pred_region
      _
    $region5: #{yolo_head_pallas.1} parent=1 // pred_fallthru
      _
    // Predicated region
    $region6: #{yolo_head_pallas.1} parent=1 // pred_check
      _
    $region7: #{yolo_head_pallas.1} parent=1 // pred_check_branch
      %13 = sbr.rel (0) target = $region9
    $region8: #{yolo_head_pallas.1} parent=1 // pred_region
      %s15 = ssub.s32 2560, 2560
      %16 = vsyncadd [#allocation3], %s15
      %s17 = sshll.u32 [#allocation2], 4
      %s18 = int_to_ptr.vmem [resolvable:$true] %s17
      %23 = dma.hbm_to_vmem [thread:$0]  %s1, 2560, %s18, [#allocation3], 512, 512, 32
    $region9: #{yolo_head_pallas.1} parent=1 // pred_fallthru
      _
    // Predicated region
    $region10: #{yolo_head_pallas.1} parent=1 // pred_check
      _
    $region11: #{yolo_head_pallas.1} parent=1 // pred_check_branch
      %25 = sbr.rel (0) target = $region13
    $region12: #{yolo_head_pallas.1} parent=1 // pred_region
      _
    $region13: #{yolo_head_pallas.1} parent=1 // pred_fallthru
      _
    // Predicated region
    $region14: #{yolo_head_pallas.1} parent=1 // pred_check
      _
    $region15: #{yolo_head_pallas.1} parent=1 // pred_check_branch
      %27 = sbr.rel (0) target = $region17
    $region16: #{yolo_head_pallas.1} parent=1 // pred_region
      _
    $region17: #{yolo_head_pallas.1} parent=1 // pred_fallthru
      _
    // Predicated region
    $region18: #{yolo_head_pallas.1} parent=1 // pred_check
      _
    $region19: #{yolo_head_pallas.1} parent=1 // pred_check_branch
      %29 = sbr.rel (0) target = $region21
    $region20: #{yolo_head_pallas.1} parent=1 // pred_region
      %30 = dma.done [#allocation3], 2560
    $region21: #{yolo_head_pallas.1} parent=1 // pred_fallthru
      _
    %v31 = vld [vmem:[%s0] sm:$0xff]
    %s32 = scalar_lea.vmem %s0, 8
    %v33 = vld [vmem:[%s32] sm:$0xff]
    %v35 = vcombine.high %v31, %v31
    %v38 = vcombine.high %v33, %v33
    %v40 = vld [vmem:[%s2] sm:$0xff]
    %v41 = vld [vmem:[%s2 + $0x8] sm:$0xff]
    %v42 = vld [vmem:[%s2 + $0x10] sm:$0xff]
    %v43 = vld [vmem:[%s2 + $0x18] sm:$0xff]
    %v44 = vld [vmem:[%s3] sm:$0xff]
    %v45 = vld [vmem:[%s3 + $0x8] sm:$0xf]
    %46 = vrot.lane.b32.xlu0 %v31, 17
    %v47 = vpop.permute.xlu0 %46
    %48 = vrot.lane.b32.xlu0 %v35, 17
    %v49 = vpop.permute.xlu0 %48
    %50 = vrot.lane.b32.xlu0 %v33, 17
    %v51 = vpop.permute.xlu0 %50
    %52 = vrot.lane.b32.xlu0 %v38, 17
    %v53 = vpop.permute.xlu0 %52
    %v54 = vlaneseq
    %v55 = vand.u32 %v54, 127
    %vm56 = vcmp.lt.s32.totalorder %v55, 17
    %v57 = vsel %vm56, %v51, %v53
    %v58 = vsel %vm56, %v49, %v51
    %v59 = vsel %vm56, %v47, %v49
    %v60 = vsel %vm56, %v53, %v47
    %61 = vrot.lane.b32.xlu0 %v31, 16
    %v62 = vpop.permute.xlu0 %61
    %63 = vrot.lane.b32.xlu0 %v35, 16
    %v64 = vpop.permute.xlu0 %63
    %65 = vrot.lane.b32.xlu0 %v33, 16
    %v66 = vpop.permute.xlu0 %65
    %67 = vrot.lane.b32.xlu0 %v38, 16
    %v68 = vpop.permute.xlu0 %67
    %vm69 = vcmp.lt.s32.totalorder %v55, 16
    %v70 = vsel %vm69, %v66, %v68
    %v71 = vsel %vm69, %v64, %v66
    %v72 = vsel %vm69, %v62, %v64
    %v73 = vsel %vm69, %v68, %v62
    %74 = vrot.lane.b32.xlu0 %v31, 15
    %v75 = vpop.permute.xlu0 %74
    %76 = vrot.lane.b32.xlu0 %v35, 15
    %v77 = vpop.permute.xlu0 %76
    %78 = vrot.lane.b32.xlu0 %v33, 15
    %v79 = vpop.permute.xlu0 %78
    %80 = vrot.lane.b32.xlu0 %v38, 15
    %v81 = vpop.permute.xlu0 %80
    %vm82 = vcmp.lt.s32.totalorder %v55, 15
    %v83 = vsel %vm82, %v79, %v81
    %v84 = vsel %vm82, %v77, %v79
    %v85 = vsel %vm82, %v75, %v77
    %v86 = vsel %vm82, %v81, %v75
    %87 = vrot.lane.b32.xlu0 %v31, 1
    %v88 = vpop.permute.xlu0 %87
    %89 = vrot.lane.b32.xlu0 %v35, 1
    %v90 = vpop.permute.xlu0 %89
    %91 = vrot.lane.b32.xlu0 %v33, 1
    %v92 = vpop.permute.xlu0 %91
    %93 = vrot.lane.b32.xlu0 %v38, 1
    %v94 = vpop.permute.xlu0 %93
    %vm95 = vcmp.lt.s32.totalorder %v55, 1
    %v96 = vsel %vm95, %v92, %v94
    %v97 = vsel %vm95, %v90, %v92
    %v98 = vsel %vm95, %v88, %v90
    %v99 = vsel %vm95, %v94, %v88
    %100 = vrot.lane.b32.xlu0 %v31, 127
    %v101 = vpop.permute.xlu0 %100
    %102 = vrot.lane.b32.xlu0 %v35, 127
    %v103 = vpop.permute.xlu0 %102
    %104 = vrot.lane.b32.xlu0 %v33, 127
    %v105 = vpop.permute.xlu0 %104
    %106 = vrot.lane.b32.xlu0 %v38, 127
    %v107 = vpop.permute.xlu0 %106
    %vm108 = vcmp.lt.s32.totalorder %v55, 127
    %v109 = vsel %vm108, %v105, %v107
    %v110 = vsel %vm108, %v103, %v105
    %v111 = vsel %vm108, %v101, %v103
    %v112 = vsel %vm108, %v107, %v101
    %113 = vrot.lane.b32.xlu0 %v31, 113
    %v114 = vpop.permute.xlu0 %113
    %115 = vrot.lane.b32.xlu0 %v35, 113
    %v116 = vpop.permute.xlu0 %115
    %117 = vrot.lane.b32.xlu0 %v33, 113
    %v118 = vpop.permute.xlu0 %117
    %119 = vrot.lane.b32.xlu0 %v38, 113
    %v120 = vpop.permute.xlu0 %119
    %vm121 = vcmp.lt.s32.totalorder %v55, 113
    %v122 = vsel %vm121, %v118, %v120
    %v123 = vsel %vm121, %v116, %v118
    %v124 = vsel %vm121, %v114, %v116
    %v125 = vsel %vm121, %v120, %v114
    %126 = vrot.lane.b32.xlu0 %v31, 112
    %v127 = vpop.permute.xlu0 %126
    %128 = vrot.lane.b32.xlu0 %v35, 112
    %v129 = vpop.permute.xlu0 %128
    %130 = vrot.lane.b32.xlu0 %v33, 112
    %v131 = vpop.permute.xlu0 %130
    %132 = vrot.lane.b32.xlu0 %v38, 112
    %v133 = vpop.permute.xlu0 %132
    %vm134 = vcmp.lt.s32.totalorder %v55, 112
    %v135 = vsel %vm134, %v131, %v133
    %v136 = vsel %vm134, %v129, %v131
    %v137 = vsel %vm134, %v127, %v129
    %v138 = vsel %vm134, %v133, %v127
    %139 = vrot.lane.b32.xlu0 %v31, 111
    %v140 = vpop.permute.xlu0 %139
    %141 = vrot.lane.b32.xlu0 %v35, 111
    %v142 = vpop.permute.xlu0 %141
    %143 = vrot.lane.b32.xlu0 %v33, 111
    %v144 = vpop.permute.xlu0 %143
    %145 = vrot.lane.b32.xlu0 %v38, 111
    %v146 = vpop.permute.xlu0 %145
    %vm147 = vcmp.lt.s32.totalorder %v55, 111
    %v148 = vsel %vm147, %v144, %v146
    %v149 = vsel %vm147, %v142, %v144
    %v150 = vsel %vm147, %v140, %v142
    %v151 = vsel %vm147, %v146, %v140
    %v156 = vrot.slane %v73, 4
    %v157 = vrot.slane %v72, 4
    %v158 = vrot.slane %v71, 4
    %v159 = vrot.slane %v70, 4
    %v168 = vrot.slane %v99, 4
    %v169 = vrot.slane %v98, 4
    %v170 = vrot.slane %v97, 4
    %v171 = vrot.slane %v96, 4
    %v180 = vrot.slane %v111, 4
    %v181 = vrot.slane %v110, 4
    %v182 = vrot.slane %v109, 4
    %v183 = vrot.slane %v112, 4
    %v192 = vrot.slane %v137, 4
    %v193 = vrot.slane %v136, 4
    %v194 = vrot.slane %v135, 4
    %v195 = vrot.slane %v138, 4
    %v200 = vrot.slane %v31, 4
    %v201 = vrot.slane %v35, 4
    %v202 = vrot.slane %v33, 4
    %v203 = vrot.slane %v38, 4
    %vm208 = vcmask 1043456
    %v209 = vsel %vm208, %v60, %v156
    %v210 = vsel %vm208, %v59, %v157
    %v211 = vsel %vm208, %v58, %v158
    %v212 = vsel %vm208, %v57, %v159
    %v213 = vsel %vm208, %v86, %v168
    %v214 = vsel %vm208, %v85, %v169
    %v215 = vsel %vm208, %v84, %v170
    %v216 = vsel %vm208, %v83, %v171
    %v217 = vsel %vm208, %v31, %v180
    %v218 = vsel %vm208, %v35, %v181
    %v219 = vsel %vm208, %v33, %v182
    %v220 = vsel %vm208, %v38, %v183
    %v221 = vsel %vm208, %v124, %v192
    %v222 = vsel %vm208, %v123, %v193
    %v223 = vsel %vm208, %v122, %v194
    %v224 = vsel %vm208, %v125, %v195
    %v225 = vsel %vm208, %v150, %v200
    %v226 = vsel %vm208, %v149, %v201
    %v227 = vsel %vm208, %v148, %v202
    %v228 = vsel %vm208, %v151, %v203
    %v229 = vld [vmem:[#allocation2] sm:$0xff]
    %v230 = vld [vmem:[#allocation2 + $0x8] sm:$0xff]
    %v231 = vld [vmem:[#allocation2 + $0x10] sm:$0xff]
    %v232 = vld [vmem:[#allocation2 + $0x18] sm:$0xff]
    %v233 = vld [vmem:[#allocation2 + $0x20] sm:$0xff]
    %v234 = vld [vmem:[#allocation2 + $0x28] sm:$0xff]
    %v235 = vld [vmem:[#allocation2 + $0x30] sm:$0xff]
    %v236 = vld [vmem:[#allocation2 + $0x38] sm:$0xff]
    %v237 = vld [vmem:[#allocation2 + $0x40] sm:$0xff]
    %v238 = vld [vmem:[#allocation2 + $0x48] sm:$0xff]
    %v239 = vld [vmem:[#allocation2 + $0x50] sm:$0xff]
    %v240 = vld [vmem:[#allocation2 + $0x58] sm:$0xff]
    %v241 = vld [vmem:[#allocation2 + $0x60] sm:$0xff]
    %v242 = vld [vmem:[#allocation2 + $0x68] sm:$0xff]
    %v243 = vld [vmem:[#allocation2 + $0x70] sm:$0xff]
    %v244 = vld [vmem:[#allocation2 + $0x78] sm:$0xff]
    %v245 = vld [vmem:[#allocation2 + $0x80] sm:$0xff]
    %v246 = vld [vmem:[#allocation2 + $0x88] sm:$0xff]
    %v247 = vld [vmem:[#allocation2 + $0x90] sm:$0xff]
    %v248 = vld [vmem:[#allocation2 + $0x98] sm:$0xff]
    %v249 = vmul.f32 %v209, %v229
    %v250 = vmul.f32 %v210, %v230
    %v251 = vmul.f32 %v211, %v231
    %v252 = vmul.f32 %v212, %v232
    %v253 = vmul.f32 %v213, %v233
    %v254 = vmul.f32 %v214, %v234
    %v255 = vmul.f32 %v215, %v235
    %v256 = vmul.f32 %v216, %v236
    %v257 = vmul.f32 %v217, %v237
    %v258 = vmul.f32 %v218, %v238
    %v259 = vmul.f32 %v219, %v239
    %v260 = vmul.f32 %v220, %v240
    %v261 = vmul.f32 %v221, %v241
    %v262 = vmul.f32 %v222, %v242
    %v263 = vmul.f32 %v223, %v243
    %v264 = vmul.f32 %v224, %v244
    %v265 = vmul.f32 %v225, %v245
    %v266 = vmul.f32 %v226, %v246
    %v267 = vmul.f32 %v227, %v247
    %v268 = vmul.f32 %v228, %v248
    %270 = vset.pattern.permute.xlu0 40
    %271 = vperm.xlu0 %270, %v40
    %v272 = vpop.permute.xlu0 %271
    %275 = vset.pattern.permute.xlu0 40
    %276 = vperm.xlu0 %275, %v41
    %v277 = vpop.permute.xlu0 %276
    %280 = vset.pattern.permute.xlu0 40
    %281 = vperm.xlu0 %280, %v42
    %v282 = vpop.permute.xlu0 %281
    %285 = vset.pattern.permute.xlu0 40
    %286 = vperm.xlu0 %285, %v43
    %v287 = vpop.permute.xlu0 %286
    %vm289 = vcmask 326656
    %v290 = vsel %vm289, %v40, 0
    %v292 = vsel %vm289, %v41, 0
    %v294 = vsel %vm289, %v42, 0
    %v296 = vsel %vm289, %v43, 0
    %298 = vmatprep.subr.mxu0 0.0
    %299 = vmatpush1.msra.mxu0 0.0
    %300 = vmatprep.subr.mxu0 0.0
    %301 = vmatpush1.msra.mxu0 0.0
    %302 = vmatprep.subr.mxu0 0.0
    %303 = vmatpush1.msra.mxu0 0.0
    %304 = vmatprep.subr.mxu0 0.0
    %305 = vmatpush1.msra.mxu0 0.0
    %306 = vmatprep.subr.mxu0 0.0
    %307 = vmatpush1.msra.mxu0 0.0
    %308 = vmatprep.subr.mxu0 0.0
    %309 = vmatpush1.msra.mxu0 0.0
    %310 = vmatprep.subr.mxu0 0.0
    %311 = vmatpush1.msra.mxu0 0.0
    %312 = vmatprep.subr.mxu0 0.0
    %313 = vmatpush1.msra.mxu0 0.0
    %314 = vmatprep.subr.mxu0 0.0
    %315 = vmatpush1.msra.mxu0 0.0
    %316 = vmatprep.subr.mxu0 0.0
    %317 = vmatpush1.msra.mxu0 0.0
    %318 = vmatprep.subr.mxu0 0.0
    %319 = vmatpush1.msra.mxu0 0.0
    %320 = vmatprep.subr.mxu0 %v266
    %321 = vmatpush1.msra.mxu0 %v265
    %322 = vmatprep.subr.mxu0 %v262
    %323 = vmatpush1.msra.mxu0 %v261
    %324 = vmatprep.subr.mxu0 %v258
    %325 = vmatpush1.msra.mxu0 %v257
    %326 = vmatprep.subr.mxu0 %v254
    %327 = vmatpush1.msra.mxu0 %v253
    %328 = vmatprep.subr.mxu0 %v250
    %329 = vmatpush1.msra.mxu0 %v249
    %330 = vmatprep.subr.mxu0 0.0
    %331 = vmatpush2.msra.mxu0 0.0
    %332 = vmatprep.subr.mxu0 0.0
    %333 = vmatpush2.msra.mxu0 0.0
    %334 = vmatprep.subr.mxu0 0.0
    %335 = vmatpush2.msra.mxu0 0.0
    %336 = vmatprep.subr.mxu0 0.0
    %337 = vmatpush2.msra.mxu0 0.0
    %338 = vmatprep.subr.mxu0 0.0
    %339 = vmatpush2.msra.mxu0 0.0
    %340 = vmatprep.subr.mxu0 0.0
    %341 = vmatpush2.msra.mxu0 0.0
    %342 = vmatprep.subr.mxu0 0.0
    %343 = vmatpush2.msra.mxu0 0.0
    %344 = vmatprep.subr.mxu0 0.0
    %345 = vmatpush2.msra.mxu0 0.0
    %346 = vmatprep.subr.mxu0 0.0
    %347 = vmatpush2.msra.mxu0 0.0
    %348 = vmatprep.subr.mxu0 0.0
    %349 = vmatpush2.msra.mxu0 0.0
    %350 = vmatprep.subr.mxu0 0.0
    %351 = vmatpush2.msra.mxu0 0.0
    %352 = vmatprep.subr.mxu0 0.0
    %353 = vmatpush2.msra.mxu0 0.0
    %354 = vmatprep.subr.mxu0 0.0
    %355 = vmatpush2.msra.mxu0 0.0
    %356 = vmatprep.subr.mxu0 0.0
    %357 = vmatpush2.msra.mxu0 0.0
    %358 = vmatprep.subr.mxu0 0.0
    %359 = vmatpush2.msra.mxu0 0.0
    %360 = vmatprep.subr.mxu0 0.0
    %361 = vmatpush2.msra.mxu0 0.0
    %362 = vmatprep.mubr.f32.mxu0 0.0
    %363 = vmatmul.mubr.f32.gmra.mxu0 %v290
    %v364 = vpop.f32.mrf.mxu0
    %v365 = vadd.f32 %v272, %v364
    %v366 = vpop.f32.mrf.mxu0
    %v367 = vadd.f32 %v272, %v366
    %368 = vmatprep.mubr.f32.mxu0 0.0
    %369 = vmatmul.mubr.f32.gmra.mxu0 %v292
    %v370 = vpop.f32.mrf.mxu0
    %v371 = vadd.f32 %v277, %v370
    %v372 = vpop.f32.mrf.mxu0
    %v373 = vadd.f32 %v277, %v372
    %374 = vmatprep.mubr.f32.mxu0 0.0
    %375 = vmatmul.mubr.f32.gmra.mxu0 %v294
    %v376 = vpop.f32.mrf.mxu0
    %v377 = vadd.f32 %v282, %v376
    %v378 = vpop.f32.mrf.mxu0
    %v379 = vadd.f32 %v282, %v378
    %380 = vmatprep.mubr.f32.mxu0 0.0
    %381 = vmatmul.mubr.f32.gmra.mxu0 %v296
    %v382 = vpop.f32.mrf.mxu0
    %v383 = vadd.f32 %v287, %v382
    %v384 = vpop.f32.mrf.mxu0
    %v385 = vadd.f32 %v287, %v384
    %386 = vdwg.mxu0
    %387 = vmatprep.subr.mxu0 0.0
    %388 = vmatpush1.msra.mxu0 0.0
    %389 = vmatprep.subr.mxu0 0.0
    %390 = vmatpush1.msra.mxu0 0.0
    %391 = vmatprep.subr.mxu0 0.0
    %392 = vmatpush1.msra.mxu0 0.0
    %393 = vmatprep.subr.mxu0 0.0
    %394 = vmatpush1.msra.mxu0 0.0
    %395 = vmatprep.subr.mxu0 0.0
    %396 = vmatpush1.msra.mxu0 0.0
    %397 = vmatprep.subr.mxu0 0.0
    %398 = vmatpush1.msra.mxu0 0.0
    %399 = vmatprep.subr.mxu0 0.0
    %400 = vmatpush1.msra.mxu0 0.0
    %401 = vmatprep.subr.mxu0 0.0
    %402 = vmatpush1.msra.mxu0 0.0
    %403 = vmatprep.subr.mxu0 0.0
    %404 = vmatpush1.msra.mxu0 0.0
    %405 = vmatprep.subr.mxu0 0.0
    %406 = vmatpush1.msra.mxu0 0.0
    %407 = vmatprep.subr.mxu0 0.0
    %408 = vmatpush1.msra.mxu0 0.0
    %409 = vmatprep.subr.mxu0 %v268
    %410 = vmatpush1.msra.mxu0 %v267
    %411 = vmatprep.subr.mxu0 %v264
    %412 = vmatpush1.msra.mxu0 %v263
    %413 = vmatprep.subr.mxu0 %v260
    %414 = vmatpush1.msra.mxu0 %v259
    %415 = vmatprep.subr.mxu0 %v256
    %416 = vmatpush1.msra.mxu0 %v255
    %417 = vmatprep.subr.mxu0 %v252
    %418 = vmatpush1.msra.mxu0 %v251
    %419 = vmatprep.subr.mxu0 0.0
    %420 = vmatpush2.msra.mxu0 0.0
    %421 = vmatprep.subr.mxu0 0.0
    %422 = vmatpush2.msra.mxu0 0.0
    %423 = vmatprep.subr.mxu0 0.0
    %424 = vmatpush2.msra.mxu0 0.0
    %425 = vmatprep.subr.mxu0 0.0
    %426 = vmatpush2.msra.mxu0 0.0
    %427 = vmatprep.subr.mxu0 0.0
    %428 = vmatpush2.msra.mxu0 0.0
    %429 = vmatprep.subr.mxu0 0.0
    %430 = vmatpush2.msra.mxu0 0.0
    %431 = vmatprep.subr.mxu0 0.0
    %432 = vmatpush2.msra.mxu0 0.0
    %433 = vmatprep.subr.mxu0 0.0
    %434 = vmatpush2.msra.mxu0 0.0
    %435 = vmatprep.subr.mxu0 0.0
    %436 = vmatpush2.msra.mxu0 0.0
    %437 = vmatprep.subr.mxu0 0.0
    %438 = vmatpush2.msra.mxu0 0.0
    %439 = vmatprep.subr.mxu0 0.0
    %440 = vmatpush2.msra.mxu0 0.0
    %441 = vmatprep.subr.mxu0 0.0
    %442 = vmatpush2.msra.mxu0 0.0
    %443 = vmatprep.subr.mxu0 0.0
    %444 = vmatpush2.msra.mxu0 0.0
    %445 = vmatprep.subr.mxu0 0.0
    %446 = vmatpush2.msra.mxu0 0.0
    %447 = vmatprep.subr.mxu0 0.0
    %448 = vmatpush2.msra.mxu0 0.0
    %449 = vmatprep.subr.mxu0 0.0
    %450 = vmatpush2.msra.mxu0 0.0
    %451 = vmatprep.mubr.f32.mxu0 0.0
    %452 = vmatmul.mubr.f32.gmra.mxu0 %v290
    %v453 = vpop.f32.mrf.mxu0
    %v454 = vadd.f32 %v272, %v453
    %v455 = vpop.f32.mrf.mxu0
    %v456 = vadd.f32 %v272, %v455
    %457 = vmatprep.mubr.f32.mxu0 0.0
    %458 = vmatmul.mubr.f32.gmra.mxu0 %v292
    %v459 = vpop.f32.mrf.mxu0
    %v460 = vadd.f32 %v277, %v459
    %v461 = vpop.f32.mrf.mxu0
    %v462 = vadd.f32 %v277, %v461
    %463 = vmatprep.mubr.f32.mxu0 0.0
    %464 = vmatmul.mubr.f32.gmra.mxu0 %v294
    %v465 = vpop.f32.mrf.mxu0
    %v466 = vadd.f32 %v282, %v465
    %v467 = vpop.f32.mrf.mxu0
    %v468 = vadd.f32 %v282, %v467
    %469 = vmatprep.mubr.f32.mxu0 0.0
    %470 = vmatmul.mubr.f32.gmra.mxu0 %v296
    %v471 = vpop.f32.mrf.mxu0
    %v472 = vadd.f32 %v287, %v471
    %v473 = vpop.f32.mrf.mxu0
    %v474 = vadd.f32 %v287, %v473
    %475 = vdwg.mxu0
    %v476 = vmax.f32 %v365, 0.0
    %v477 = vmax.f32 %v367, 0.0
    %v478 = vmax.f32 %v454, 0.0
    %v479 = vmax.f32 %v456, 0.0
    %v480 = vmax.f32 %v371, 0.0
    %v481 = vmax.f32 %v373, 0.0
    %v482 = vmax.f32 %v460, 0.0
    %v483 = vmax.f32 %v462, 0.0
    %v484 = vmax.f32 %v377, 0.0
    %v485 = vmax.f32 %v379, 0.0
    %v486 = vmax.f32 %v466, 0.0
    %v487 = vmax.f32 %v468, 0.0
    %v488 = vmax.f32 %v383, 0.0
    %v489 = vmax.f32 %v385, 0.0
    %v490 = vmax.f32 %v472, 0.0
    %v491 = vmax.f32 %v474, 0.0
    %vm492 = vcmask 261120
    %v494 = vsel %vm492, %v45, 0
    %496 = vmatprep.subr.mxu0 0.0
    %497 = vmatpush1.msra.mxu0 0.0
    %498 = vmatprep.subr.mxu0 0.0
    %499 = vmatpush1.msra.mxu0 0.0
    %500 = vmatprep.subr.mxu0 0.0
    %501 = vmatpush1.msra.mxu0 0.0
    %502 = vmatprep.subr.mxu0 0.0
    %503 = vmatpush1.msra.mxu0 0.0
    %504 = vmatprep.subr.mxu0 0.0
    %505 = vmatpush1.msra.mxu0 0.0
    %506 = vmatprep.subr.mxu0 0.0
    %507 = vmatpush1.msra.mxu0 0.0
    %508 = vmatprep.subr.mxu0 0.0
    %509 = vmatpush1.msra.mxu0 0.0
    %510 = vmatprep.subr.mxu0 0.0
    %511 = vmatpush1.msra.mxu0 0.0
    %512 = vmatprep.subr.mxu0 0.0
    %513 = vmatpush1.msra.mxu0 0.0
    %514 = vmatprep.subr.mxu0 0.0
    %515 = vmatpush1.msra.mxu0 0.0
    %516 = vmatprep.subr.mxu0 0.0
    %517 = vmatpush1.msra.mxu0 0.0
    %518 = vmatprep.subr.mxu0 0.0
    %519 = vmatpush1.msra.mxu0 0.0
    %520 = vmatprep.subr.mxu0 %v489
    %521 = vmatpush1.msra.mxu0 %v488
    %522 = vmatprep.subr.mxu0 %v485
    %523 = vmatpush1.msra.mxu0 %v484
    %524 = vmatprep.subr.mxu0 %v481
    %525 = vmatpush1.msra.mxu0 %v480
    %526 = vmatprep.subr.mxu0 %v477
    %527 = vmatpush1.msra.mxu0 %v476
    %528 = vmatprep.subr.mxu0 0.0
    %529 = vmatpush2.msra.mxu0 0.0
    %530 = vmatprep.subr.mxu0 0.0
    %531 = vmatpush2.msra.mxu0 0.0
    %532 = vmatprep.subr.mxu0 0.0
    %533 = vmatpush2.msra.mxu0 0.0
    %534 = vmatprep.subr.mxu0 0.0
    %535 = vmatpush2.msra.mxu0 0.0
    %536 = vmatprep.subr.mxu0 0.0
    %537 = vmatpush2.msra.mxu0 0.0
    %538 = vmatprep.subr.mxu0 0.0
    %539 = vmatpush2.msra.mxu0 0.0
    %540 = vmatprep.subr.mxu0 0.0
    %541 = vmatpush2.msra.mxu0 0.0
    %542 = vmatprep.subr.mxu0 0.0
    %543 = vmatpush2.msra.mxu0 0.0
    %544 = vmatprep.subr.mxu0 0.0
    %545 = vmatpush2.msra.mxu0 0.0
    %546 = vmatprep.subr.mxu0 0.0
    %547 = vmatpush2.msra.mxu0 0.0
    %548 = vmatprep.subr.mxu0 0.0
    %549 = vmatpush2.msra.mxu0 0.0
    %550 = vmatprep.subr.mxu0 0.0
    %551 = vmatpush2.msra.mxu0 0.0
    %552 = vmatprep.subr.mxu0 0.0
    %553 = vmatpush2.msra.mxu0 0.0
    %554 = vmatprep.subr.mxu0 0.0
    %555 = vmatpush2.msra.mxu0 0.0
    %556 = vmatprep.subr.mxu0 0.0
    %557 = vmatpush2.msra.mxu0 0.0
    %558 = vmatprep.subr.mxu0 0.0
    %559 = vmatpush2.msra.mxu0 0.0
    %560 = vmatprep.mubr.f32.mxu0 0.0
    %561 = vmatmul.mubr.f32.gmra.mxu0 %v494
    %v562 = vpop.f32.mrf.mxu0
    %v563 = vadd.f32 0.0, %v562
    %v564 = vpop.f32.mrf.mxu0
    %v565 = vadd.f32 0.0, %v564
    %566 = vdwg.mxu0
    %567 = vmatprep.subr.mxu0 0.0
    %568 = vmatpush1.msra.mxu0 0.0
    %569 = vmatprep.subr.mxu0 0.0
    %570 = vmatpush1.msra.mxu0 0.0
    %571 = vmatprep.subr.mxu0 0.0
    %572 = vmatpush1.msra.mxu0 0.0
    %573 = vmatprep.subr.mxu0 0.0
    %574 = vmatpush1.msra.mxu0 0.0
    %575 = vmatprep.subr.mxu0 0.0
    %576 = vmatpush1.msra.mxu0 0.0
    %577 = vmatprep.subr.mxu0 0.0
    %578 = vmatpush1.msra.mxu0 0.0
    %579 = vmatprep.subr.mxu0 0.0
    %580 = vmatpush1.msra.mxu0 0.0
    %581 = vmatprep.subr.mxu0 0.0
    %582 = vmatpush1.msra.mxu0 0.0
    %583 = vmatprep.subr.mxu0 0.0
    %584 = vmatpush1.msra.mxu0 0.0
    %585 = vmatprep.subr.mxu0 0.0
    %586 = vmatpush1.msra.mxu0 0.0
    %587 = vmatprep.subr.mxu0 0.0
    %588 = vmatpush1.msra.mxu0 0.0
    %589 = vmatprep.subr.mxu0 0.0
    %590 = vmatpush1.msra.mxu0 0.0
    %591 = vmatprep.subr.mxu0 %v491
    %592 = vmatpush1.msra.mxu0 %v490
    %593 = vmatprep.subr.mxu0 %v487
    %594 = vmatpush1.msra.mxu0 %v486
    %595 = vmatprep.subr.mxu0 %v483
    %596 = vmatpush1.msra.mxu0 %v482
    %597 = vmatprep.subr.mxu0 %v479
    %598 = vmatpush1.msra.mxu0 %v478
    %599 = vmatprep.subr.mxu0 0.0
    %600 = vmatpush2.msra.mxu0 0.0
    %601 = vmatprep.subr.mxu0 0.0
    %602 = vmatpush2.msra.mxu0 0.0
    %603 = vmatprep.subr.mxu0 0.0
    %604 = vmatpush2.msra.mxu0 0.0
    %605 = vmatprep.subr.mxu0 0.0
    %606 = vmatpush2.msra.mxu0 0.0
    %607 = vmatprep.subr.mxu0 0.0
    %608 = vmatpush2.msra.mxu0 0.0
    %609 = vmatprep.subr.mxu0 0.0
    %610 = vmatpush2.msra.mxu0 0.0
    %611 = vmatprep.subr.mxu0 0.0
    %612 = vmatpush2.msra.mxu0 0.0
    %613 = vmatprep.subr.mxu0 0.0
    %614 = vmatpush2.msra.mxu0 0.0
    %615 = vmatprep.subr.mxu0 0.0
    %616 = vmatpush2.msra.mxu0 0.0
    %617 = vmatprep.subr.mxu0 0.0
    %618 = vmatpush2.msra.mxu0 0.0
    %619 = vmatprep.subr.mxu0 0.0
    %620 = vmatpush2.msra.mxu0 0.0
    %621 = vmatprep.subr.mxu0 0.0
    %622 = vmatpush2.msra.mxu0 0.0
    %623 = vmatprep.subr.mxu0 0.0
    %624 = vmatpush2.msra.mxu0 0.0
    %625 = vmatprep.subr.mxu0 0.0
    %626 = vmatpush2.msra.mxu0 0.0
    %627 = vmatprep.subr.mxu0 0.0
    %628 = vmatpush2.msra.mxu0 0.0
    %629 = vmatprep.subr.mxu0 0.0
    %630 = vmatpush2.msra.mxu0 0.0
    %631 = vmatprep.mubr.f32.mxu0 0.0
    %632 = vmatmul.mubr.f32.gmra.mxu0 %v494
    %v633 = vpop.f32.mrf.mxu0
    %v634 = vadd.f32 0.0, %v633
    %v635 = vpop.f32.mrf.mxu0
    %v636 = vadd.f32 0.0, %v635
    %637 = vdwg.mxu0
    %vm638 = vcmask 1041408
    %v639 = vsel %vm638, %v563, 0.0
    %v640 = vsel %vm638, %v565, 0.0
    %v641 = vadd.f32 %v639, %v640
    %642 = vadd.xlane.f32.xlu0 %v641
    %v643 = vpop.xlane.xlu0 %642
    %v644 = vmul.f32 %v643, 0.00390625
    %v645 = vmax.f32 %v644, 0.0
    %v646 = vsel %vm638, %v634, 0.0
    %v647 = vsel %vm638, %v636, 0.0
    %v648 = vadd.f32 %v646, %v647
    %649 = vadd.xlane.f32.xlu0 %v648
    %v650 = vpop.xlane.xlu0 %649
    %v651 = vmul.f32 %v650, 0.00390625
    %v652 = vmax.f32 %v651, 0.0
    %v654 = vrot.slane %v645, 6
    %v656 = vmul.f32 %v45, %v654
    %v658 = vrot.slane %v656, 2
    %vm660 = vcmask 254976
    %v661 = vsel %vm660, %v658, 0.0
    %v662 = vrot.slane %v661, 4
    %v663 = vadd.f32 %v661, %v662
    %v664 = vrot.slane %v663, 2
    %v665 = vadd.f32 %v663, %v664
    %v666 = vrot.slane %v665, 1
    %v667 = vadd.f32 %v665, %v666
    %v668 = vxor.u32 %v667, 2147483648
    %v669 = vmul.f32 %v668, 1.442695
    %v670 = vpow.pop %v669
    %v671 = vadd.f32 %v670, 1.0
    %v672 = vrcp.pop %v671
    %v673 = vmul.f32 1.0, %v672
    %v675 = vrot.slane %v652, 6
    %v677 = vmul.f32 %v45, %v675
    %v679 = vrot.slane %v677, 2
    %v681 = vsel %vm660, %v679, 0.0
    %v682 = vrot.slane %v681, 4
    %v683 = vadd.f32 %v681, %v682
    %v684 = vrot.slane %v683, 2
    %v685 = vadd.f32 %v683, %v684
    %v686 = vrot.slane %v685, 1
    %v687 = vadd.f32 %v685, %v686
    %v688 = vxor.u32 %v687, 2147483648
    %v689 = vmul.f32 %v688, 1.442695
    %v690 = vpow.pop %v689
    %v691 = vadd.f32 %v690, 1.0
    %v692 = vrcp.pop %v691
    %v693 = vmul.f32 1.0, %v692
    %v694 = vmul.f32 %v44, %v673
    %696 = vset.pattern.permute.xlu0 32
    %697 = vperm.xlu0 %696, %v44
    %v698 = vpop.permute.xlu0 %697
    %v701 = vsel %vm492, %v694, 0
    %703 = vmatprep.subr.mxu0 0.0
    %704 = vmatpush1.msra.mxu0 0.0
    %705 = vmatprep.subr.mxu0 0.0
    %706 = vmatpush1.msra.mxu0 0.0
    %707 = vmatprep.subr.mxu0 0.0
    %708 = vmatpush1.msra.mxu0 0.0
    %709 = vmatprep.subr.mxu0 0.0
    %710 = vmatpush1.msra.mxu0 0.0
    %711 = vmatprep.subr.mxu0 0.0
    %712 = vmatpush1.msra.mxu0 0.0
    %713 = vmatprep.subr.mxu0 0.0
    %714 = vmatpush1.msra.mxu0 0.0
    %715 = vmatprep.subr.mxu0 0.0
    %716 = vmatpush1.msra.mxu0 0.0
    %717 = vmatprep.subr.mxu0 0.0
    %718 = vmatpush1.msra.mxu0 0.0
    %719 = vmatprep.subr.mxu0 0.0
    %720 = vmatpush1.msra.mxu0 0.0
    %721 = vmatprep.subr.mxu0 0.0
    %722 = vmatpush1.msra.mxu0 0.0
    %723 = vmatprep.subr.mxu0 0.0
    %724 = vmatpush1.msra.mxu0 0.0
    %725 = vmatprep.subr.mxu0 0.0
    %726 = vmatpush1.msra.mxu0 0.0
    %727 = vmatprep.subr.mxu0 %v489
    %728 = vmatpush1.msra.mxu0 %v488
    %729 = vmatprep.subr.mxu0 %v485
    %730 = vmatpush1.msra.mxu0 %v484
    %731 = vmatprep.subr.mxu0 %v481
    %732 = vmatpush1.msra.mxu0 %v480
    %733 = vmatprep.subr.mxu0 %v477
    %734 = vmatpush1.msra.mxu0 %v476
    %735 = vmatprep.subr.mxu0 0.0
    %736 = vmatpush2.msra.mxu0 0.0
    %737 = vmatprep.subr.mxu0 0.0
    %738 = vmatpush2.msra.mxu0 0.0
    %739 = vmatprep.subr.mxu0 0.0
    %740 = vmatpush2.msra.mxu0 0.0
    %741 = vmatprep.subr.mxu0 0.0
    %742 = vmatpush2.msra.mxu0 0.0
    %743 = vmatprep.subr.mxu0 0.0
    %744 = vmatpush2.msra.mxu0 0.0
    %745 = vmatprep.subr.mxu0 0.0
    %746 = vmatpush2.msra.mxu0 0.0
    %747 = vmatprep.subr.mxu0 0.0
    %748 = vmatpush2.msra.mxu0 0.0
    %749 = vmatprep.subr.mxu0 0.0
    %750 = vmatpush2.msra.mxu0 0.0
    %751 = vmatprep.subr.mxu0 0.0
    %752 = vmatpush2.msra.mxu0 0.0
    %753 = vmatprep.subr.mxu0 0.0
    %754 = vmatpush2.msra.mxu0 0.0
    %755 = vmatprep.subr.mxu0 0.0
    %756 = vmatpush2.msra.mxu0 0.0
    %757 = vmatprep.subr.mxu0 0.0
    %758 = vmatpush2.msra.mxu0 0.0
    %759 = vmatprep.subr.mxu0 0.0
    %760 = vmatpush2.msra.mxu0 0.0
    %761 = vmatprep.subr.mxu0 0.0
    %762 = vmatpush2.msra.mxu0 0.0
    %763 = vmatprep.subr.mxu0 0.0
    %764 = vmatpush2.msra.mxu0 0.0
    %765 = vmatprep.subr.mxu0 0.0
    %766 = vmatpush2.msra.mxu0 0.0
    %767 = vmatprep.mubr.f32.mxu0 0.0
    %768 = vmatmul.mubr.f32.gmra.mxu0 %v701
    %v769 = vpop.f32.mrf.mxu0
    %v770 = vadd.f32 %v698, %v769
    %v771 = vpop.f32.mrf.mxu0
    %v772 = vadd.f32 %v698, %v771
    %773 = vdwg.mxu0
    %v774 = vmul.f32 %v44, %v693
    %v776 = vsel %vm492, %v774, 0
    %778 = vmatprep.subr.mxu0 0.0
    %779 = vmatpush1.msra.mxu0 0.0
    %780 = vmatprep.subr.mxu0 0.0
    %781 = vmatpush1.msra.mxu0 0.0
    %782 = vmatprep.subr.mxu0 0.0
    %783 = vmatpush1.msra.mxu0 0.0
    %784 = vmatprep.subr.mxu0 0.0
    %785 = vmatpush1.msra.mxu0 0.0
    %786 = vmatprep.subr.mxu0 0.0
    %787 = vmatpush1.msra.mxu0 0.0
    %788 = vmatprep.subr.mxu0 0.0
    %789 = vmatpush1.msra.mxu0 0.0
    %790 = vmatprep.subr.mxu0 0.0
    %791 = vmatpush1.msra.mxu0 0.0
    %792 = vmatprep.subr.mxu0 0.0
    %793 = vmatpush1.msra.mxu0 0.0
    %794 = vmatprep.subr.mxu0 0.0
    %795 = vmatpush1.msra.mxu0 0.0
    %796 = vmatprep.subr.mxu0 0.0
    %797 = vmatpush1.msra.mxu0 0.0
    %798 = vmatprep.subr.mxu0 0.0
    %799 = vmatpush1.msra.mxu0 0.0
    %800 = vmatprep.subr.mxu0 0.0
    %801 = vmatpush1.msra.mxu0 0.0
    %802 = vmatprep.subr.mxu0 %v491
    %803 = vmatpush1.msra.mxu0 %v490
    %804 = vmatprep.subr.mxu0 %v487
    %805 = vmatpush1.msra.mxu0 %v486
    %806 = vmatprep.subr.mxu0 %v483
    %807 = vmatpush1.msra.mxu0 %v482
    %808 = vmatprep.subr.mxu0 %v479
    %809 = vmatpush1.msra.mxu0 %v478
    %810 = vmatprep.subr.mxu0 0.0
    %811 = vmatpush2.msra.mxu0 0.0
    %812 = vmatprep.subr.mxu0 0.0
    %813 = vmatpush2.msra.mxu0 0.0
    %814 = vmatprep.subr.mxu0 0.0
    %815 = vmatpush2.msra.mxu0 0.0
    %816 = vmatprep.subr.mxu0 0.0
    %817 = vmatpush2.msra.mxu0 0.0
    %818 = vmatprep.subr.mxu0 0.0
    %819 = vmatpush2.msra.mxu0 0.0
    %820 = vmatprep.subr.mxu0 0.0
    %821 = vmatpush2.msra.mxu0 0.0
    %822 = vmatprep.subr.mxu0 0.0
    %823 = vmatpush2.msra.mxu0 0.0
    %824 = vmatprep.subr.mxu0 0.0
    %825 = vmatpush2.msra.mxu0 0.0
    %826 = vmatprep.subr.mxu0 0.0
    %827 = vmatpush2.msra.mxu0 0.0
    %828 = vmatprep.subr.mxu0 0.0
    %829 = vmatpush2.msra.mxu0 0.0
    %830 = vmatprep.subr.mxu0 0.0
    %831 = vmatpush2.msra.mxu0 0.0
    %832 = vmatprep.subr.mxu0 0.0
    %833 = vmatpush2.msra.mxu0 0.0
    %834 = vmatprep.subr.mxu0 0.0
    %835 = vmatpush2.msra.mxu0 0.0
    %836 = vmatprep.subr.mxu0 0.0
    %837 = vmatpush2.msra.mxu0 0.0
    %838 = vmatprep.subr.mxu0 0.0
    %839 = vmatpush2.msra.mxu0 0.0
    %840 = vmatprep.subr.mxu0 0.0
    %841 = vmatpush2.msra.mxu0 0.0
    %842 = vmatprep.mubr.f32.mxu0 0.0
    %843 = vmatmul.mubr.f32.gmra.mxu0 %v776
    %v844 = vpop.f32.mrf.mxu0
    %v845 = vadd.f32 %v698, %v844
    %v846 = vpop.f32.mrf.mxu0
    %v847 = vadd.f32 %v698, %v846
    %848 = vdwg.mxu0
    %849 = vst [vmem:[%s4] sm:$0xff] %v770
    %850 = vst [vmem:[%s4 + $0x8] sm:$0xff] %v772
    %s851 = scalar_lea.vmem %s4, 16
    %852 = vst [vmem:[%s851] sm:$0xff] %v845
    %853 = vst [vmem:[%s851 + $0x8] sm:$0xff] %v847
    // Predicated region
    $region22: #{yolo_head_pallas.1} parent=1 // pred_check
      _
    $region23: #{yolo_head_pallas.1} parent=1 // pred_check_branch
      %855 = sbr.rel (0) target = $region25
    $region24: #{yolo_head_pallas.1} parent=1 // pred_region
      _
    $region25: #{yolo_head_pallas.1} parent=1 // pred_fallthru
      _
    // Predicated region
    $region26: #{yolo_head_pallas.1} parent=1 // pred_check
      _
    $region27: #{yolo_head_pallas.1} parent=1 // pred_check_branch
      %857 = sbr.rel (0) target = $region29
    $region28: #{yolo_head_pallas.1} parent=1 // pred_region
      _
    $region29: #{yolo_head_pallas.1} parent=1 // pred_fallthru
      _
    %858 = vsyncpa [#allocation3], 1

</llo_original>
